<compile_context>
chip_gen: v7x
topology: tpu7x:2x2x1
jax: 0.10.0
libtpu: 0.0.40
codegen_flags: <defaults>
</compile_context>

<pallas_src>
import math

import jax
import jax.numpy as jnp
from jax.experimental import pallas as pl
from jax.experimental.pallas import tpu as pltpu


def _round_up(a, b):
    return ((a + b - 1) // b) * b


def _sigmoid(x):
    return 1.0 / (1.0 + jnp.exp(-x))


def _gelu_tanh(x):
    c = 0.7978845608028654  # sqrt(2/pi)
    return 0.5 * x * (1.0 + jnp.tanh(c * (x + 0.044715 * x * x * x)))


# ---------------------------------------------------------------------------
# Fused, tiled matmul:  out = [LN_in](x) @ w (+ bias) [-> LN_out chain] (+ residual)
#   grid (M/tm, N/tn, K/tk), f32 VMEM accumulator, bf16 MXU inputs.
#   LN_in fusion  -> single K block (enforced by wrapper; stats use real K).
#   LN_out fusion -> single N block (enforced by wrapper; stats use real N).
# ---------------------------------------------------------------------------
def _make_linear_kernel(nk, k_real, n_real, has_ln_in, has_bias, n_ln_out, has_res):
    inv_k = 1.0 / float(k_real)
    inv_n = 1.0 / float(n_real)

    def kernel(*refs):
        it = iter(refs)
        x_ref = next(it)
        if has_ln_in:
            gi_ref = next(it)
            bi_ref = next(it)
        w_ref = next(it)
        b_ref = next(it) if has_bias else None
        ln_out_refs = [(next(it), next(it)) for _ in range(n_ln_out)]
        res_ref = next(it) if has_res else None
        o_ref = next(it)
        acc_ref = next(it)

        k = pl.program_id(2)

        @pl.when(k == 0)
        def _():
            acc_ref[...] = jnp.zeros_like(acc_ref)

        x = x_ref[...]
        if has_ln_in:
            # zero-padded K lanes contribute 0 to the sums; divide by the real K
            s1 = jnp.sum(x, axis=-1, keepdims=True)
            s2 = jnp.sum(x * x, axis=-1, keepdims=True)
            mu = s1 * inv_k
            var = s2 * inv_k - mu * mu
            x = (x - mu) * jax.lax.rsqrt(var + 1e-5) * gi_ref[...] + bi_ref[...]

        acc_ref[...] += jnp.dot(x.astype(jnp.bfloat16), w_ref[...],
                                preferred_element_type=jnp.float32)

        @pl.when(k == nk - 1)
        def _():
            y = acc_ref[...]
            if has_bias:
                y = y + b_ref[...]
            for g_ref, be_ref in ln_out_refs:
                s1 = jnp.sum(y, axis=-1, keepdims=True)
                s2 = jnp.sum(y * y, axis=-1, keepdims=True)
                mu = s1 * inv_n
                var = s2 * inv_n - mu * mu
                y = (y - mu) * jax.lax.rsqrt(var + 1e-5) * g_ref[...] + be_ref[...]
            if has_res:
                y = y + res_ref[...]
            o_ref[...] = y

    return kernel


def linear_fused(x, w, b=None, *, ln_in=None, ln_out=(), residual=None):
    """x:(M,K) f32, w:(K,N) bf16/f32, b:(1,N) f32, residual:(M,N) f32 -> (M,N) f32."""
    M, K = x.shape
    Kw, N = w.shape
    assert Kw == K

    tm = min(128, _round_up(M, 8))
    Mp = _round_up(M, tm)
    if ln_out:
        tn = _round_up(N, 128)                 # LN over N needs a single N block
        Np = tn
    else:
        tn = min(256, _round_up(N, 128))
        Np = _round_up(N, tn)
    if ln_in is not None:
        tk = _round_up(K, 128)                 # LN over K needs a single K block
        Kp = tk
    else:
        tk = min(1024, _round_up(K, 128))
        Kp = _round_up(K, tk)
    nm, nn, nk = Mp // tm, Np // tn, Kp // tk

    args = [jnp.pad(x, ((0, Mp - M), (0, Kp - K)))]
    in_specs = [pl.BlockSpec((tm, tk), lambda i, j, k: (i, k))]
    if ln_in is not None:
        g, beta = ln_in
        args.append(jnp.pad(g.reshape(1, K), ((0, 0), (0, Kp - K))))
        args.append(jnp.pad(beta.reshape(1, K), ((0, 0), (0, Kp - K))))
        in_specs += [pl.BlockSpec((1, tk), lambda i, j, k: (0, k))] * 2
    args.append(jnp.pad(w.astype(jnp.bfloat16), ((0, Kp - K), (0, Np - N))))
    in_specs.append(pl.BlockSpec((tk, tn), lambda i, j, k: (k, j)))
    if b is not None:
        args.append(jnp.pad(b.reshape(1, N), ((0, 0), (0, Np - N))))
        in_specs.append(pl.BlockSpec((1, tn), lambda i, j, k: (0, j)))
    for g, beta in ln_out:
        args.append(jnp.pad(g.reshape(1, N), ((0, 0), (0, Np - N))))
        args.append(jnp.pad(beta.reshape(1, N), ((0, 0), (0, Np - N))))
        in_specs += [pl.BlockSpec((1, tn), lambda i, j, k: (0, j))] * 2
    if residual is not None:
        args.append(jnp.pad(residual, ((0, Mp - M), (0, Np - N))))
        in_specs.append(pl.BlockSpec((tm, tn), lambda i, j, k: (i, j)))

    kernel = _make_linear_kernel(nk, K, N, ln_in is not None, b is not None,
                                 len(ln_out), residual is not None)
    out = pl.pallas_call(
        kernel,
        out_shape=jax.ShapeDtypeStruct((Mp, Np), jnp.float32),
        grid=(nm, nn, nk),
        in_specs=in_specs,
        out_specs=pl.BlockSpec((tm, tn), lambda i, j, k: (i, j)),
        scratch_shapes=[pltpu.VMEM((tm, tn), jnp.float32)],
        compiler_params=pltpu.CompilerParams(
            dimension_semantics=("parallel", "parallel", "arbitrary")),
    )(*args)
    return out[:M, :N]


# ---- causal depthwise conv1d (Mamba conv, k=4, keep first L) + SiLU --------
def _causal_dwconv1d_silu_kernel(xp_ref, w_ref, b_ref, o_ref):
    L = o_ref.shape[1]
    C = o_ref.shape[2]
    acc = jnp.zeros((L, C), jnp.float32) + b_ref[...]
    for k in range(w_ref.shape[0]):                      # d_conv = 4, static unroll
        acc = acc + w_ref[k:k + 1, :] * xp_ref[0, k:k + L, :]
    o_ref[0] = acc * _sigmoid(acc)                       # SiLU


def causal_dwconv1d_silu(xpad, w, b):
    bz, Lp, C = xpad.shape
    K = w.shape[0]
    L = Lp - (K - 1)
    return pl.pallas_call(
        _causal_dwconv1d_silu_kernel,
        out_shape=jax.ShapeDtypeStruct((bz, L, C), jnp.float32),
        grid=(bz,),
        in_specs=[pl.BlockSpec((1, Lp, C), lambda i: (i, 0, 0)),
                  pl.BlockSpec((K, C), lambda i: (0, 0)),
                  pl.BlockSpec((1, C), lambda i: (0, 0))],
        out_specs=pl.BlockSpec((1, L, C), lambda i: (i, 0, 0)),
        compiler_params=pltpu.CompilerParams(dimension_semantics=("parallel",)),
    )(xpad, w, b)


# ---- depthwise 3x3x3 conv3d (DWConv of MambaMlp) + fused GELU epilogue -----
def _dwconv3d_gelu_kernel(xp_ref, w_ref, b_ref, o_ref):
    _, nf, H, W, C = o_ref.shape
    acc = jnp.zeros((nf, H, W, C), jnp.float32) + b_ref[...].reshape(1, 1, 1, C)
    for kt in range(3):
        for ky in range(3):
            for kx in range(3):
                idx = kt * 9 + ky * 3 + kx
                acc = acc + (w_ref[idx:idx + 1, :].reshape(1, 1, 1, C) *
                             xp_ref[0, kt:kt + nf, ky:ky + H, kx:kx + W, :])
    o_ref[0] = _gelu_tanh(acc)                           # fused activation


def dwconv3d_gelu(x, w, b):
    bz, nf, H, W, C = x.shape
    xp = jnp.pad(x, ((0, 0), (1, 1), (1, 1), (1, 1), (0, 0)))
    # TODO(synk): on v7x (64 MiB VMEM) tile over nf/H with halos for large H*W*C volumes.
    return pl.pallas_call(
        _dwconv3d_gelu_kernel,
        out_shape=jax.ShapeDtypeStruct((bz, nf, H, W, C), jnp.float32),
        grid=(bz,),
        in_specs=[pl.BlockSpec((1, nf + 2, H + 2, W + 2, C),
                               lambda i: (i, 0, 0, 0, 0)),
                  pl.BlockSpec((27, C), lambda i: (0, 0)),
                  pl.BlockSpec((1, C), lambda i: (0, 0))],
        out_specs=pl.BlockSpec((1, nf, H, W, C), lambda i: (i, 0, 0, 0, 0)),
        compiler_params=pltpu.CompilerParams(dimension_semantics=("parallel",)),
    )(xp, w, b)


# ---- selective scan (Mamba SSM recurrence), vectorized over d_state --------
def _selective_scan_kernel(u_ref, dt_ref, z_ref, B_ref, C_ref, At_ref, D_ref, y_ref):
    L = u_ref.shape[1]
    d_state, d_inner = At_ref.shape
    A_T = At_ref[...]                                    # (d_state, d_inner), negative
    D = D_ref[...]                                       # (1, d_inner)
    # (d_state, d_state) identity used to move B_t / C_t from lanes onto sublanes
    r = jax.lax.broadcasted_iota(jnp.int32, (d_state, d_state), 0)
    c = jax.lax.broadcasted_iota(jnp.int32, (d_state, d_state), 1)
    eye = (r == c).astype(jnp.float32)

    def body(t, state):                                  # state: (d_state, d_inner) carry
        u_t = u_ref[0, pl.ds(t, 1), :]                   # (1, d_inner)
        z_t = z_ref[0, pl.ds(t, 1), :]
        dtr = dt_ref[0, pl.ds(t, 1), :]
        dt_t = jnp.maximum(dtr, 0.0) + jnp.log(1.0 + jnp.exp(-jnp.abs(dtr)))  # softplus
        B_t = B_ref[0, pl.ds(t, 1), :]                   # (1, d_state)
        C_t = C_ref[0, pl.ds(t, 1), :]
        B_col = jnp.sum(eye * B_t, axis=1, keepdims=True)    # (d_state, 1)
        C_col = jnp.sum(eye * C_t, axis=1, keepdims=True)
        state = state * jnp.exp(dt_t * A_T) + B_col * (dt_t * u_t)
        y = jnp.sum(state * C_col, axis=0, keepdims=True) + D * u_t
        y_ref[0, pl.ds(t, 1), :] = y * (z_t * _sigmoid(z_t))  # SiLU(z) gate
        return state

    jax.lax.fori_loop(0, L, body, jnp.zeros((d_state, d_inner), jnp.float32))


def selective_scan(u, dt, z, A_T, D, B_seq, C_seq):
    bz, L, d_inner = u.shape
    d_state = A_T.shape[0]
    tok = pl.BlockSpec((1, L, d_inner), lambda b: (b, 0, 0))
    bc = pl.BlockSpec((1, L, d_state), lambda b: (b, 0, 0))
    return pl.pallas_call(
        _selective_scan_kernel,
        out_shape=jax.ShapeDtypeStruct((bz, L, d_inner), jnp.float32),
        grid=(bz,),
        in_specs=[tok, tok, tok, bc, bc,
                  pl.BlockSpec((d_state, d_inner), lambda b: (0, 0)),
                  pl.BlockSpec((1, d_inner), lambda b: (0, 0))],
        out_specs=tok,
        compiler_params=pltpu.CompilerParams(dimension_semantics=("parallel",)),
    )(u, dt, z, B_seq, C_seq, A_T, D)


# --------------------------------------------------------------------------
# JAX glue (reshapes / im2col / parameter construction)
# --------------------------------------------------------------------------
def im2col(x, k, stride, pad):
    """x:(B,H,W,C) channels-last -> (B*Ho*Wo, k*k*C), Ho, Wo."""
    B, H, W, C = x.shape
    xp = jnp.pad(x, ((0, 0), (pad, pad), (pad, pad), (0, 0)))
    Ho = (H + 2 * pad - k) // stride + 1
    Wo = (W + 2 * pad - k) // stride + 1
    cols = []
    for ky in range(k):
        for kx in range(k):
            sl = xp[:, ky:ky + (Ho - 1) * stride + 1:stride,
                    kx:kx + (Wo - 1) * stride + 1:stride, :]
            cols.append(sl)
    patches = jnp.concatenate(cols, axis=-1)
    return patches.reshape(B * Ho * Wo, k * k * C), Ho, Wo


def _normal(key, shape, std=0.02):
    return std * jax.random.normal(key, shape, dtype=jnp.float32)


def init_block_params(key, dim, d_state=16, d_conv=4, expand=2, mlp_ratio=4):
    d_inner = expand * dim
    dt_rank = math.ceil(dim / 16)
    hid = int(dim * mlp_ratio)
    ks = jax.random.split(key, 8)
    xproj_w = _normal(ks[2], (d_inner, dt_rank + 2 * d_state))
    dtproj_w = _normal(ks[3], (dt_rank, d_inner), std=0.1)
    dtproj_b = jnp.full((1, d_inner), 0.01, jnp.float32)
    # fuse x_proj's dt slice with dt_proj:  columns ordered [dt | B | C]
    xdt_w = jnp.concatenate([xproj_w[:, :dt_rank] @ dtproj_w, xproj_w[:, dt_rank:]], axis=1)
    xdt_b = jnp.concatenate([dtproj_b, jnp.zeros((1, 2 * d_state), jnp.float32)], axis=1)
    return {
        'dim': dim, 'd_state': d_state, 'd_inner': d_inner, 'd_conv': d_conv,
        'norm1_g': jnp.ones((1, dim), jnp.float32), 'norm1_b': jnp.zeros((1, dim), jnp.float32),
        'norm2_g': jnp.ones((1, dim), jnp.float32), 'norm2_b': jnp.zeros((1, dim), jnp.float32),
        # Mamba (weights for the MXU kept in bf16)
        'in_w': _normal(ks[0], (dim, 2 * d_inner)).astype(jnp.bfloat16),
        'conv_w': _normal(ks[1], (d_conv, d_inner), std=0.1),
        'conv_b': jnp.zeros((1, d_inner), jnp.float32),
        'xdt_w': xdt_w.astype(jnp.bfloat16), 'xdt_b': xdt_b,
        'A_logT': (jnp.log(jnp.arange(1, d_state + 1, dtype=jnp.float32))[:, None]
                   * jnp.ones((1, d_inner), jnp.float32)),
        'D': jnp.ones((1, d_inner), jnp.float32),
        'out_w': _normal(ks[4], (d_inner, dim)).astype(jnp.bfloat16),
        # MLP
        'fc1_w': _normal(ks[5], (dim, hid)).astype(jnp.bfloat16),
        'fc1_b': jnp.zeros((1, hid), jnp.float32),
        'dw_w': _normal(ks[6], (27, hid), std=0.1), 'dw_b': jnp.zeros((1, hid), jnp.float32),
        'fc2_w': _normal(ks[7], (hid, dim)).astype(jnp.bfloat16),
        'fc2_b': jnp.zeros((1, dim), jnp.float32),
    }


def init_encoder_params(key, dims, depths):
    patch_sizes = [7, 3, 3, 3]
    strides = [4, 2, 2, 2]
    in_channels = [2, 64, 128, 256]
    params = []
    for i, dim in enumerate(dims):
        key, k0, kb = jax.random.split(key, 3)
        ps, k_in = patch_sizes[i], in_channels[i]
        bkeys = jax.random.split(kb, depths[i])
        params.append({
            'patch_size': ps, 'stride': strides[i],
            'proj_w': _normal(k0, (ps * ps * k_in, dim)).astype(jnp.bfloat16),
            'proj_b': jnp.zeros((1, dim), jnp.float32),
            'pe_ln_g': jnp.ones((1, dim), jnp.float32), 'pe_ln_b': jnp.zeros((1, dim), jnp.float32),
            'st_ln_g': jnp.ones((1, dim), jnp.float32), 'st_ln_b': jnp.zeros((1, dim), jnp.float32),
            'blocks': [init_block_params(bkeys[j], dim) for j in range(depths[i])],
        })
    return params


# --------------------------------------------------------------------------
# Forward pass
# --------------------------------------------------------------------------
def mamba_block_forward(x_vol, p):
    """x_vol: (bz, nf, H, W, dim) -> same shape.  (= MambaBlock on (bz, dim, nf, H, W))"""
    bz, nf, H, W, dim = x_vol.shape
    L = nf * H * W
    d_inner, d_state = p['d_inner'], p['d_state']
    x_flat = x_vol.reshape(bz * L, dim)

    # --- Mamba branch: fused LN(norm1)+in_proj; fused out_proj+residual ---
    xz = linear_fused(x_flat, p['in_w'], None, ln_in=(p['norm1_g'], p['norm1_b']))
    x_in = xz[:, :d_inner].reshape(bz, L, d_inner)
    z = xz[:, d_inner:].reshape(bz, L, d_inner)

    xpad = jnp.pad(x_in, ((0, 0), (p['d_conv'] - 1, 0), (0, 0)))           # causal pad
    x_conv = causal_dwconv1d_silu(xpad, p['conv_w'], p['conv_b'])          # (bz, L, d_inner)

    dbc = linear_fused(x_conv.reshape(bz * L, d_inner), p['xdt_w'], p['xdt_b'])
    dt = dbc[:, :d_inner].reshape(bz, L, d_inner)
    B_seq = dbc[:, d_inner:d_inner + d_state].reshape(bz, L, d_state)
    C_seq = dbc[:, d_inner + d_state:d_inner + 2 * d_state].reshape(bz, L, d_state)

    A_T = -jnp.exp(p['A_logT'])                                            # (d_state, d_inner)
    y = selective_scan(x_conv, dt, z, A_T, p['D'], B_seq, C_seq)
    x1 = linear_fused(y.reshape(bz * L, d_inner), p['out_w'], None, residual=x_flat)

    # --- MLP branch: fused LN(norm2)+fc1; dwconv3d+GELU; fused fc2+residual ---
    f1 = linear_fused(x1, p['fc1_w'], p['fc1_b'], ln_in=(p['norm2_g'], p['norm2_b']))
    hid = p['fc1_w'].shape[1]
    a = dwconv3d_gelu(f1.reshape(bz, nf, H, W, hid), p['dw_w'], p['dw_b'])
    x2 = linear_fused(a.reshape(bz * L, hid), p['fc2_w'], p['fc2_b'], residual=x1)
    return x2.reshape(bz, nf, H, W, dim)


def patch_embed(x_img, p):
    """Conv2d via im2col + one fused matmul (bias + PatchEmbeddings.LN + encoder stage LN)."""
    patches, Ho, Wo = im2col(x_img, p['patch_size'], p['stride'], p['patch_size'] // 2)
    emb = linear_fused(patches, p['proj_w'], p['proj_b'],
                       ln_out=((p['pe_ln_g'], p['pe_ln_b']),
                               (p['st_ln_g'], p['st_ln_b'])))
    return emb, Ho, Wo


def mamba_encoder_forward(x, params):
    """x: (bz, nf, C_in, H, W)  ->  tuple of per-stage features (bz*nf, H_s, W_s, C_s)."""
    bz, nf, c_in, H, W = x.shape
    hs = jnp.transpose(x.reshape(bz * nf, c_in, H, W), (0, 2, 3, 1))   # NCHW -> NHWC
    outs = []
    for p in params:
        emb, Ho, Wo = patch_embed(hs, p)
        C = p['pe_ln_g'].shape[-1]
        x_vol = emb.reshape(bz, nf, Ho, Wo, C)
        for bp in p['blocks']:
            x_vol = mamba_block_forward(x_vol, bp)
        hs = x_vol.reshape(bz * nf, Ho, Wo, C)
        outs.append(hs)
    return tuple(outs)


# --------------------------------------------------------------------------
if __name__ == "__main__":
    key = jax.random.PRNGKey(0)
    kx, kp = jax.random.split(key)

    # small shapes: batch=2, clip_len(nf)=2, in-channels=2 (encoder hard-codes 2), 16x16 spatial
    bz, nf, c_in, H, W = 2, 2, 2, 16, 16
    x = jax.random.normal(kx, (bz, nf, c_in, H, W), dtype=jnp.float32)

    dims = [64, 128, 256, 512]
    depths = [1, 1, 1, 1]
    params = init_encoder_params(kp, dims, depths)

    outs = mamba_encoder_forward(x, params)
    for o in outs:
        o.block_until_ready()

    expected = [(bz * nf, 4, 4, 64), (bz * nf, 2, 2, 128),
                (bz * nf, 1, 1, 256), (bz * nf, 1, 1, 512)]
    assert [tuple(o.shape) for o in outs] == expected, [o.shape for o in outs]
    assert all(bool(jnp.all(jnp.isfinite(o))) for o in outs)
    print("KERNEL_OK")
</pallas_src>

<mosaic_0001>
module attributes {stable_mosaic.version = 11 : i64} {
  func.func @kernel(%arg0: i32, %arg1: i32, %arg2: i32, %arg3: memref<64x128xf32, #tpu.memory_space<vmem>>, %arg4: memref<128x128xbf16, #tpu.memory_space<vmem>>, %arg5: memref<1x128xf32, #tpu.memory_space<vmem>>, %arg6: memref<1x128xf32, #tpu.memory_space<vmem>>, %arg7: memref<1x128xf32, #tpu.memory_space<vmem>>, %arg8: memref<1x128xf32, #tpu.memory_space<vmem>>, %arg9: memref<1x128xf32, #tpu.memory_space<vmem>>, %arg10: memref<64x128xf32, #tpu.memory_space<vmem>>, %arg11: memref<64x128xf32, #tpu.memory_space<vmem>>) attributes {dimension_semantics = [#tpu.dimension_semantics<parallel>, #tpu.dimension_semantics<parallel>, #tpu.dimension_semantics<arbitrary>], iteration_bounds = array<i64: 1, 1, 1>, scalar_prefetch = 0 : i64, scratch_operands = 1 : i64, tpu.core_type = #tpu.core_type<tc>, window_params = [{transform_indices = @transform_0, window_bounds = array<i64: 64, 128>}, {transform_indices = @transform_1, window_bounds = array<i64: 128, 128>}, {transform_indices = @transform_2, window_bounds = array<i64: 1, 128>}, {transform_indices = @transform_3, window_bounds = array<i64: 1, 128>}, {transform_indices = @transform_4, window_bounds = array<i64: 1, 128>}, {transform_indices = @transform_5, window_bounds = array<i64: 1, 128>}, {transform_indices = @transform_6, window_bounds = array<i64: 1, 128>}, {transform_indices = @transform_7, window_bounds = array<i64: 64, 128>}]} {
    %c0_i32 = arith.constant 0 : i32
    %0 = arith.cmpi eq, %arg2, %c0_i32 : i32
    %1 = arith.extui %0 : i1 to i32
    %c0_i32_0 = arith.constant 0 : i32
    %2 = arith.cmpi ne, %1, %c0_i32_0 : i32
    scf.if %2 {
      %cst_10 = arith.constant 0.000000e+00 : f32
      %13 = vector.broadcast %cst_10 : f32 to vector<64x128xf32>
      %c0_11 = arith.constant 0 : index
      %c0_12 = arith.constant 0 : index
      %14 = vector.load %arg11[%c0_11, %c0_12] : memref<64x128xf32, #tpu.memory_space<vmem>>, vector<64x128xf32>
      tpu.vector_store %arg11[%c0_11, %c0_12], %13 {strides = array<i32>} : memref<64x128xf32, #tpu.memory_space<vmem>>, vector<64x128xf32>,
    } else {
    }
    %c0 = arith.constant 0 : index
    %c0_1 = arith.constant 0 : index
    %3 = vector.load %arg3[%c0, %c0_1] : memref<64x128xf32, #tpu.memory_space<vmem>>, vector<64x128xf32>
    %c0_2 = arith.constant 0 : index
    %c0_3 = arith.constant 0 : index
    %4 = vector.load %arg11[%c0_2, %c0_3] : memref<64x128xf32, #tpu.memory_space<vmem>>, vector<64x128xf32>
    %5 = arith.truncf %3 : vector<64x128xf32> to vector<64x128xbf16>
    %c0_4 = arith.constant 0 : index
    %c0_5 = arith.constant 0 : index
    %6 = vector.load %arg4[%c0_4, %c0_5] : memref<128x128xbf16, #tpu.memory_space<vmem>>, vector<128x128xbf16>
    %cst = arith.constant dense<0.000000e+00> : vector<64x128xf32>
    %7 = tpu.matmul %5, %6, %cst {dimension_numbers = #tpu.dot_dimension_numbers<[1], [0], [0], [1], [0, 0, 1, 1], [], []>} : vector<64x128xbf16>, vector<128x128xbf16>, vector<64x128xf32> -> vector<64x128xf32>
    %8 = arith.addf %4, %7 : vector<64x128xf32>
    %c0_6 = arith.constant 0 : index
    %c0_7 = arith.constant 0 : index
    %9 = vector.load %arg11[%c0_6, %c0_7] : memref<64x128xf32, #tpu.memory_space<vmem>>, vector<64x128xf32>
    tpu.vector_store %arg11[%c0_6, %c0_7], %8 {strides = array<i32>} : memref<64x128xf32, #tpu.memory_space<vmem>>, vector<64x128xf32>,
    %c0_i32_8 = arith.constant 0 : i32
    %10 = arith.cmpi eq, %arg2, %c0_i32_8 : i32
    %11 = arith.extui %10 : i1 to i32
    %c0_i32_9 = arith.constant 0 : i32
    %12 = arith.cmpi ne, %11, %c0_i32_9 : i32
    scf.if %12 {
      %c0_10 = arith.constant 0 : index
      %c0_11 = arith.constant 0 : index
      %13 = vector.load %arg11[%c0_10, %c0_11] : memref<64x128xf32, #tpu.memory_space<vmem>>, vector<64x128xf32>
      %c0_12 = arith.constant 0 : index
      %c0_13 = arith.constant 0 : index
      %14 = vector.load %arg5[%c0_12, %c0_13] : memref<1x128xf32, #tpu.memory_space<vmem>>, vector<1x128xf32>
      %15 = vector.broadcast %14 : vector<1x128xf32> to vector<64x128xf32>
      %16 = arith.addf %13, %15 : vector<64x128xf32>
      %cst_14 = arith.constant dense<0.000000e+00> : vector<64xf32>
      %17 = vector.multi_reduction <add>, %16, %cst_14 [1] : vector<64x128xf32> to vector<64xf32>
      %18 = vector.shape_cast %17 : vector<64xf32> to vector<64x1xf32>
      %19 = arith.mulf %16, %16 : vector<64x128xf32>
      %cst_15 = arith.constant dense<0.000000e+00> : vector<64xf32>
      %20 = vector.multi_reduction <add>, %19, %cst_15 [1] : vector<64x128xf32> to vector<64xf32>
      %21 = vector.shape_cast %20 : vector<64xf32> to vector<64x1xf32>
      %cst_16 = arith.constant 1.562500e-02 : f32
      %22 = vector.broadcast %cst_16 : f32 to vector<64x1xf32>
      %23 = arith.mulf %18, %22 : vector<64x1xf32>
      %cst_17 = arith.constant 1.562500e-02 : f32
      %24 = vector.broadcast %cst_17 : f32 to vector<64x1xf32>
      %25 = arith.mulf %21, %24 : vector<64x1xf32>
      %26 = arith.mulf %23, %23 : vector<64x1xf32>
      %27 = arith.subf %25, %26 : vector<64x1xf32>
      %28 = vector.broadcast %23 : vector<64x1xf32> to vector<64x128xf32>
      %29 = arith.subf %16, %28 : vector<64x128xf32>
      %cst_18 = arith.constant 9.99999974E-6 : f32
      %30 = vector.broadcast %cst_18 : f32 to vector<64x1xf32>
      %31 = arith.addf %27, %30 : vector<64x1xf32>
      %32 = math.rsqrt %31 : vector<64x1xf32>
      %33 = vector.broadcast %32 : vector<64x1xf32> to vector<64x128xf32>
      %34 = arith.mulf %29, %33 : vector<64x128xf32>
      %c0_19 = arith.constant 0 : index
      %c0_20 = arith.constant 0 : index
      %35 = vector.load %arg6[%c0_19, %c0_20] : memref<1x128xf32, #tpu.memory_space<vmem>>, vector<1x128xf32>
      %36 = vector.broadcast %35 : vector<1x128xf32> to vector<64x128xf32>
      %37 = arith.mulf %34, %36 : vector<64x128xf32>
      %c0_21 = arith.constant 0 : index
      %c0_22 = arith.constant 0 : index
      %38 = vector.load %arg7[%c0_21, %c0_22] : memref<1x128xf32, #tpu.memory_space<vmem>>, vector<1x128xf32>
      %39 = vector.broadcast %38 : vector<1x128xf32> to vector<64x128xf32>
      %40 = arith.addf %37, %39 : vector<64x128xf32>
      %cst_23 = arith.constant dense<0.000000e+00> : vector<64xf32>
      %41 = vector.multi_reduction <add>, %40, %cst_23 [1] : vector<64x128xf32> to vector<64xf32>
      %42 = vector.shape_cast %41 : vector<64xf32> to vector<64x1xf32>
      %43 = arith.mulf %40, %40 : vector<64x128xf32>
      %cst_24 = arith.constant dense<0.000000e+00> : vector<64xf32>
      %44 = vector.multi_reduction <add>, %43, %cst_24 [1] : vector<64x128xf32> to vector<64xf32>
      %45 = vector.shape_cast %44 : vector<64xf32> to vector<64x1xf32>
      %cst_25 = arith.constant 1.562500e-02 : f32
      %46 = vector.broadcast %cst_25 : f32 to vector<64x1xf32>
      %47 = arith.mulf %42, %46 : vector<64x1xf32>
      %cst_26 = arith.constant 1.562500e-02 : f32
      %48 = vector.broadcast %cst_26 : f32 to vector<64x1xf32>
      %49 = arith.mulf %45, %48 : vector<64x1xf32>
      %50 = arith.mulf %47, %47 : vector<64x1xf32>
      %51 = arith.subf %49, %50 : vector<64x1xf32>
      %52 = vector.broadcast %47 : vector<64x1xf32> to vector<64x128xf32>
      %53 = arith.subf %40, %52 : vector<64x128xf32>
      %cst_27 = arith.constant 9.99999974E-6 : f32
      %54 = vector.broadcast %cst_27 : f32 to vector<64x1xf32>
      %55 = arith.addf %51, %54 : vector<64x1xf32>
      %56 = math.rsqrt %55 : vector<64x1xf32>
      %57 = vector.broadcast %56 : vector<64x1xf32> to vector<64x128xf32>
      %58 = arith.mulf %53, %57 : vector<64x128xf32>
      %c0_28 = arith.constant 0 : index
      %c0_29 = arith.constant 0 : index
      %59 = vector.load %arg8[%c0_28, %c0_29] : memref<1x128xf32, #tpu.memory_space<vmem>>, vector<1x128xf32>
      %60 = vector.broadcast %59 : vector<1x128xf32> to vector<64x128xf32>
      %61 = arith.mulf %58, %60 : vector<64x128xf32>
      %c0_30 = arith.constant 0 : index
      %c0_31 = arith.constant 0 : index
      %62 = vector.load %arg9[%c0_30, %c0_31] : memref<1x128xf32, #tpu.memory_space<vmem>>, vector<1x128xf32>
      %63 = vector.broadcast %62 : vector<1x128xf32> to vector<64x128xf32>
      %64 = arith.addf %61, %63 : vector<64x128xf32>
      %c0_32 = arith.constant 0 : index
      %c0_33 = arith.constant 0 : index
      %65 = vector.load %arg10[%c0_32, %c0_33] : memref<64x128xf32, #tpu.memory_space<vmem>>, vector<64x128xf32>
      tpu.vector_store %arg10[%c0_32, %c0_33], %64 {strides = array<i32>} : memref<64x128xf32, #tpu.memory_space<vmem>>, vector<64x128xf32>,
    } else {
    }
    return
  }
  func.func @transform_0(%arg0: i32, %arg1: i32, %arg2: i32) -> (i32, i32) {
    %c0_i32 = arith.constant 0 : i32
    return %arg0, %arg2 : i32, i32
  }
  func.func @transform_1(%arg0: i32, %arg1: i32, %arg2: i32) -> (i32, i32) {
    %c0_i32 = arith.constant 0 : i32
    return %arg2, %arg1 : i32, i32
  }
  func.func @transform_2(%arg0: i32, %arg1: i32, %arg2: i32) -> (i32, i32) {
    %c0_i32 = arith.constant 0 : i32
    %c0_i32_0 = arith.constant 0 : i32
    return %c0_i32, %arg1 : i32, i32
  }
  func.func @transform_3(%arg0: i32, %arg1: i32, %arg2: i32) -> (i32, i32) {
    %c0_i32 = arith.constant 0 : i32
    %c0_i32_0 = arith.constant 0 : i32
    return %c0_i32, %arg1 : i32, i32
  }
  func.func @transform_4(%arg0: i32, %arg1: i32, %arg2: i32) -> (i32, i32) {
    %c0_i32 = arith.constant 0 : i32
    %c0_i32_0 = arith.constant 0 : i32
    return %c0_i32, %arg1 : i32, i32
  }
  func.func @transform_5(%arg0: i32, %arg1: i32, %arg2: i32) -> (i32, i32) {
    %c0_i32 = arith.constant 0 : i32
    %c0_i32_0 = arith.constant 0 : i32
    return %c0_i32, %arg1 : i32, i32
  }
  func.func @transform_6(%arg0: i32, %arg1: i32, %arg2: i32) -> (i32, i32) {
    %c0_i32 = arith.constant 0 : i32
    %c0_i32_0 = arith.constant 0 : i32
    return %c0_i32, %arg1 : i32, i32
  }
  func.func @transform_7(%arg0: i32, %arg1: i32, %arg2: i32) -> (i32, i32) {
    %c0_i32 = arith.constant 0 : i32
    return %arg0, %arg1 : i32, i32
  }
}

</mosaic_0001>

<llo_original>
// kernel: tpu_custom_call.1
$region0: #{tpu_custom_call.1}
  #allocation0 [shape = 'u32[]', space=smem, size = 0x4, offset = 0x4, fixed_abs, tag = 'smem constant byte address 0x4 - core index']
  #allocation1 [shape = 'u32[144,128]{1,0:T(1,128)}', space=vmem, size = 0x12000, scoped, tag = 'internal scratch']
  #allocation2 [shape = 'f32[64,128]{1,0:T(8,128)}', space=vmem, size = 0x8000, scoped, tag = 'scratch operand']
  %s0 = inlined_call_operand.hbm [shape: f32[64,128], index: 0, kind: input, shape index: {}]
  %s1 = inlined_call_operand.hbm [shape: bf16[128,128], index: 1, kind: input, shape index: {}]
  %s2 = inlined_call_operand.vmem [shape: f32[1,128], index: 2, kind: input, shape index: {}]
  %s3 = inlined_call_operand.vmem [shape: f32[1,128], index: 3, kind: input, shape index: {}]
  %s4 = inlined_call_operand.vmem [shape: f32[1,128], index: 4, kind: input, shape index: {}]
  %s5 = inlined_call_operand.vmem [shape: f32[1,128], index: 5, kind: input, shape index: {}]
  %s6 = inlined_call_operand.vmem [shape: f32[1,128], index: 6, kind: input, shape index: {}]
  %s7 = inlined_call_operand.hbm [shape: f32[64,128], index: 7, kind: output, shape index: {}]
  %s8 = sld [smem:[#allocation0]]
  $region54: #{tpu_custom_call.1} parent=0
    _
  %s10 = ssub.s32 1, %s8
  %s11 = scalar_select 0, %s10, %s8
  $region1: #{tpu_custom_call.1} parent=0
    #allocation3 [shape = 'u8[32768]{0}', space=vmem, size = 0x8000, scoped, tag = 'input window, operand 0, single buffered']
    #allocation4 [shape = 's32[1]{0}', space=sflag, size = 0x4, scoped, tag = 'scoped memory for tpu_custom_call.1']
    #allocation5 [shape = 's32[1]{0}', space=sflag, size = 0x4, scoped, tag = 'scoped memory for tpu_custom_call.1']
    #allocation6 [shape = 'u8[32768]{0}', space=vmem, size = 0x8000, scoped, tag = 'input window, operand 1, single buffered']
    #allocation7 [shape = 's32[1]{0}', space=sflag, size = 0x4, scoped, tag = 'scoped memory for tpu_custom_call.1']
    #allocation8 [shape = 'u8[32768]{0}', space=vmem, size = 0x8000, scoped, tag = 'output window, operand 0, single buffered']
    %12 = vsyncpa [#allocation4], 0
    %13 = vsyncpa [#allocation7], 0
    %14 = vsyncpa [#allocation5], 0
    // Predicated region
    $region2: #{tpu_custom_call.1} parent=1 // pred_check
      _
    $region3: #{tpu_custom_call.1} parent=1 // pred_check_branch
      %16 = sbr.rel (0) target = $region5
    $region4: #{tpu_custom_call.1} parent=1 // pred_region
      %s18 = ssub.s32 1024, 1024
      %19 = vsyncadd [#allocation4], %s18
      %s20 = sshll.u32 [#allocation3], 4
      %s21 = int_to_ptr.vmem [resolvable:$true] %s20
      %26 = dma.hbm_to_vmem [thread:$0]  %s0, 1024, %s21, [#allocation4], 128, 128, 8
    $region5: #{tpu_custom_call.1} parent=1 // pred_fallthru
      _
    // Predicated region
    $region6: #{tpu_custom_call.1} parent=1 // pred_check
      _
    $region7: #{tpu_custom_call.1} parent=1 // pred_check_branch
      %28 = sbr.rel (0) target = $region9
    $region8: #{tpu_custom_call.1} parent=1 // pred_region
      %s30 = ssub.s32 1024, 1024
      %31 = vsyncadd [#allocation7], %s30
      %s32 = sshll.u32 [#allocation6], 4
      %s33 = int_to_ptr.vmem [resolvable:$true] %s32
      %38 = dma.hbm_to_vmem [thread:$0]  %s1, 1024, %s33, [#allocation7], 64, 64, 4
    $region9: #{tpu_custom_call.1} parent=1 // pred_fallthru
      _
    // Predicated region
    $region10: #{tpu_custom_call.1} parent=1 // pred_check
      _
    $region11: #{tpu_custom_call.1} parent=1 // pred_check_branch
      %40 = sbr.rel (0) target = $region13
    $region12: #{tpu_custom_call.1} parent=1 // pred_region
      _
    $region13: #{tpu_custom_call.1} parent=1 // pred_fallthru
      _
    // Predicated region
    $region14: #{tpu_custom_call.1} parent=1 // pred_check
      _
    $region15: #{tpu_custom_call.1} parent=1 // pred_check_branch
      %42 = sbr.rel (0) target = $region17
    $region16: #{tpu_custom_call.1} parent=1 // pred_region
      _
    $region17: #{tpu_custom_call.1} parent=1 // pred_fallthru
      _
    // Predicated region
    $region18: #{tpu_custom_call.1} parent=1 // pred_check
      _
    $region19: #{tpu_custom_call.1} parent=1 // pred_check_branch
      %44 = sbr.rel (0) target = $region21
    $region20: #{tpu_custom_call.1} parent=1 // pred_region
      _
    $region21: #{tpu_custom_call.1} parent=1 // pred_fallthru
      _
    // Predicated region
    $region22: #{tpu_custom_call.1} parent=1 // pred_check
      _
    $region23: #{tpu_custom_call.1} parent=1 // pred_check_branch
      %46 = sbr.rel (0) target = $region25
    $region24: #{tpu_custom_call.1} parent=1 // pred_region
      _
    $region25: #{tpu_custom_call.1} parent=1 // pred_fallthru
      _
    // Predicated region
    $region26: #{tpu_custom_call.1} parent=1 // pred_check
      _
    $region27: #{tpu_custom_call.1} parent=1 // pred_check_branch
      %48 = sbr.rel (0) target = $region29
    $region28: #{tpu_custom_call.1} parent=1 // pred_region
      _
    $region29: #{tpu_custom_call.1} parent=1 // pred_fallthru
      _
    // Predicated region
    $region30: #{tpu_custom_call.1} parent=1 // pred_check
      _
    $region31: #{tpu_custom_call.1} parent=1 // pred_check_branch
      %50 = sbr.rel (0) target = $region33
    $region32: #{tpu_custom_call.1} parent=1 // pred_region
      %51 = dma.done [#allocation4], 1024
    $region33: #{tpu_custom_call.1} parent=1 // pred_fallthru
      _
    // Predicated region
    $region34: #{tpu_custom_call.1} parent=1 // pred_check
      _
    $region35: #{tpu_custom_call.1} parent=1 // pred_check_branch
      %53 = sbr.rel (0) target = $region37
    $region36: #{tpu_custom_call.1} parent=1 // pred_region
      %54 = dma.done [#allocation7], 1024
    $region37: #{tpu_custom_call.1} parent=1 // pred_fallthru
      _
    %p56 = scmp.eq.s32.totalorder 0, 0
    // Predicated region
    $region38: #{tpu_custom_call.1} parent=1 // pred_check
      %p57 = pneg %p56
    $region39: #{tpu_custom_call.1} parent=1 // pred_check_branch
      %59 = sbr.rel (%p57) target = $region41
    $region40: #{tpu_custom_call.1} parent=1 // pred_region
      %60 = vst [vmem:[#allocation2] sm:$0xff] 0.0
      %61 = vst [vmem:[#allocation2 + $0x8] sm:$0xff] 0.0
      %62 = vst [vmem:[#allocation2 + $0x10] sm:$0xff] 0.0
      %63 = vst [vmem:[#allocation2 + $0x18] sm:$0xff] 0.0
      %64 = vst [vmem:[#allocation2 + $0x20] sm:$0xff] 0.0
      %65 = vst [vmem:[#allocation2 + $0x28] sm:$0xff] 0.0
      %66 = vst [vmem:[#allocation2 + $0x30] sm:$0xff] 0.0
      %67 = vst [vmem:[#allocation2 + $0x38] sm:$0xff] 0.0
    $region41: #{tpu_custom_call.1} parent=1 // pred_fallthru
      _
    %v68 = vld [vmem:[#allocation3] sm:$0xff]
    %v69 = vld [vmem:[#allocation3 + $0x8] sm:$0xff]
    %v70 = vld [vmem:[#allocation3 + $0x10] sm:$0xff]
    %v71 = vld [vmem:[#allocation3 + $0x18] sm:$0xff]
    %v72 = vld [vmem:[#allocation3 + $0x20] sm:$0xff]
    %v73 = vld [vmem:[#allocation3 + $0x28] sm:$0xff]
    %v74 = vld [vmem:[#allocation3 + $0x30] sm:$0xff]
    %v75 = vld [vmem:[#allocation3 + $0x38] sm:$0xff]
    %v76 = vld [vmem:[#allocation2] sm:$0xff]
    %v77 = vld [vmem:[#allocation2 + $0x8] sm:$0xff]
    %v78 = vld [vmem:[#allocation2 + $0x10] sm:$0xff]
    %v79 = vld [vmem:[#allocation2 + $0x18] sm:$0xff]
    %v80 = vld [vmem:[#allocation2 + $0x20] sm:$0xff]
    %v81 = vld [vmem:[#allocation2 + $0x28] sm:$0xff]
    %v82 = vld [vmem:[#allocation2 + $0x30] sm:$0xff]
    %v83 = vld [vmem:[#allocation2 + $0x38] sm:$0xff]
    %v84 = vpack.c.bf16 %v69, %v68
    %v85 = vpack.c.bf16 %v71, %v70
    %v86 = vpack.c.bf16 %v73, %v72
    %v87 = vpack.c.bf16 %v75, %v74
    %v88 = vld [vmem:[#allocation6] sm:$0xf]
    %v89 = vld [vmem:[#allocation6 + $0x4] sm:$0xf]
    %v90 = vld [vmem:[#allocation6 + $0x8] sm:$0xf]
    %v91 = vld [vmem:[#allocation6 + $0xc] sm:$0xf]
    %v92 = vld [vmem:[#allocation6 + $0x10] sm:$0xf]
    %v93 = vld [vmem:[#allocation6 + $0x14] sm:$0xf]
    %v94 = vld [vmem:[#allocation6 + $0x18] sm:$0xf]
    %v95 = vld [vmem:[#allocation6 + $0x1c] sm:$0xf]
    %v96 = vld [vmem:[#allocation6 + $0x20] sm:$0xf]
    %v97 = vld [vmem:[#allocation6 + $0x24] sm:$0xf]
    %v98 = vld [vmem:[#allocation6 + $0x28] sm:$0xf]
    %v99 = vld [vmem:[#allocation6 + $0x2c] sm:$0xf]
    %v100 = vld [vmem:[#allocation6 + $0x30] sm:$0xf]
    %v101 = vld [vmem:[#allocation6 + $0x34] sm:$0xf]
    %v102 = vld [vmem:[#allocation6 + $0x38] sm:$0xf]
    %v103 = vld [vmem:[#allocation6 + $0x3c] sm:$0xf]
    %v120 = vunpack.c.l.b16 %v88
    %v121 = vunpack.c.l.b16 %v89
    %v122 = vunpack.c.l.b16 %v90
    %v123 = vunpack.c.l.b16 %v91
    %v124 = vunpack.c.l.b16 %v92
    %v125 = vunpack.c.l.b16 %v93
    %v126 = vunpack.c.l.b16 %v94
    %v127 = vunpack.c.l.b16 %v95
    %v128 = vunpack.c.l.b16 %v96
    %v129 = vunpack.c.l.b16 %v97
    %v130 = vunpack.c.l.b16 %v98
    %v131 = vunpack.c.l.b16 %v99
    %v132 = vunpack.c.l.b16 %v100
    %v133 = vunpack.c.l.b16 %v101
    %v134 = vunpack.c.l.b16 %v102
    %v135 = vunpack.c.l.b16 %v103
    %v136 = vpack.c.b16 %v121, %v120
    %v137 = vpack.c.b16 %v123, %v122
    %v138 = vpack.c.b16 %v125, %v124
    %v139 = vpack.c.b16 %v127, %v126
    %v140 = vpack.c.b16 %v129, %v128
    %v141 = vpack.c.b16 %v131, %v130
    %v142 = vpack.c.b16 %v133, %v132
    %v143 = vpack.c.b16 %v135, %v134
    %152 = vmatprep.subr.bf16.mxu0 0
    %153 = vmatpush1.bf16.msra.mxu0 %v136
    %154 = vmatprep.subr.bf16.mxu0 0
    %155 = vmatpush1.bf16.msra.mxu0 %v137
    %156 = vmatprep.subr.bf16.mxu0 0
    %157 = vmatpush1.bf16.msra.mxu0 %v138
    %158 = vmatprep.subr.bf16.mxu0 0
    %159 = vmatpush1.bf16.msra.mxu0 %v139
    %160 = vmatprep.subr.bf16.mxu0 0
    %161 = vmatpush1.bf16.msra.mxu0 %v140
    %162 = vmatprep.subr.bf16.mxu0 0
    %163 = vmatpush1.bf16.msra.mxu0 %v141
    %164 = vmatprep.subr.bf16.mxu0 0
    %165 = vmatpush1.bf16.msra.mxu0 %v142
    %166 = vmatprep.subr.bf16.mxu0 0
    %167 = vmatpush1.bf16.msra.mxu0 %v143
    %168 = vmatprep.subr.bf16.mxu0 0
    %169 = vmatpush1.bf16.msra.mxu0 0
    %170 = vmatprep.subr.bf16.mxu0 0
    %171 = vmatpush1.bf16.msra.mxu0 0
    %172 = vmatprep.subr.bf16.mxu0 0
    %173 = vmatpush1.bf16.msra.mxu0 0
    %174 = vmatprep.subr.bf16.mxu0 0
    %175 = vmatpush1.bf16.msra.mxu0 0
    %176 = vmatprep.subr.bf16.mxu0 0
    %177 = vmatpush1.bf16.msra.mxu0 0
    %178 = vmatprep.subr.bf16.mxu0 0
    %179 = vmatpush1.bf16.msra.mxu0 0
    %180 = vmatprep.subr.bf16.mxu0 0
    %181 = vmatpush1.bf16.msra.mxu0 0
    %182 = vmatprep.subr.bf16.mxu0 0
    %183 = vmatpush1.bf16.msra.mxu0 0
    %184 = vmatprep.mubr.bf16.mxu0 0
    %185 = vmatmul.mubr.bf16.gmra.mrb[0].mxu0 %v84
    %v186 = vpop.f32.mrb[0].mxu0
    %v187 = vadd.f32 0.0, %v186
    %v188 = vpop.f32.mrb[0].mxu0
    %v189 = vpop.f32.mrb[0].mxu0
    %v190 = vadd.f32 0.0, %v189
    %v191 = vpop.f32.mrb[0].mxu0
    %192 = vmatprep.mubr.bf16.mxu0 0
    %193 = vmatmul.mubr.bf16.gmra.mrb[0].mxu0 %v85
    %v194 = vpop.f32.mrb[0].mxu0
    %v195 = vadd.f32 0.0, %v194
    %v196 = vpop.f32.mrb[0].mxu0
    %v197 = vpop.f32.mrb[0].mxu0
    %v198 = vadd.f32 0.0, %v197
    %v199 = vpop.f32.mrb[0].mxu0
    %200 = vmatprep.mubr.bf16.mxu0 0
    %201 = vmatmul.mubr.bf16.gmra.mrb[0].mxu0 %v86
    %v202 = vpop.f32.mrb[0].mxu0
    %v203 = vadd.f32 0.0, %v202
    %v204 = vpop.f32.mrb[0].mxu0
    %v205 = vpop.f32.mrb[0].mxu0
    %v206 = vadd.f32 0.0, %v205
    %v207 = vpop.f32.mrb[0].mxu0
    %208 = vmatprep.mubr.bf16.mxu0 0
    %209 = vmatmul.mubr.bf16.gmra.mrb[0].mxu0 %v87
    %v210 = vpop.f32.mrb[0].mxu0
    %v211 = vadd.f32 0.0, %v210
    %v212 = vpop.f32.mrb[0].mxu0
    %v213 = vpop.f32.mrb[0].mxu0
    %v214 = vadd.f32 0.0, %v213
    %v215 = vpop.f32.mrb[0].mxu0
    %216 = vdwg.mxu0
    %v217 = vadd.f32 %v76, %v187
    %v218 = vadd.f32 %v77, %v190
    %v219 = vadd.f32 %v78, %v195
    %v220 = vadd.f32 %v79, %v198
    %v221 = vadd.f32 %v80, %v203
    %v222 = vadd.f32 %v81, %v206
    %v223 = vadd.f32 %v82, %v211
    %v224 = vadd.f32 %v83, %v214
    %225 = vst [vmem:[#allocation2] sm:$0xff] %v217
    %226 = vst [vmem:[#allocation2 + $0x8] sm:$0xff] %v218
    %227 = vst [vmem:[#allocation2 + $0x10] sm:$0xff] %v219
    %228 = vst [vmem:[#allocation2 + $0x18] sm:$0xff] %v220
    %229 = vst [vmem:[#allocation2 + $0x20] sm:$0xff] %v221
    %230 = vst [vmem:[#allocation2 + $0x28] sm:$0xff] %v222
    %231 = vst [vmem:[#allocation2 + $0x30] sm:$0xff] %v223
    %232 = vst [vmem:[#allocation2 + $0x38] sm:$0xff] %v224
    // Predicated region
    $region42: #{tpu_custom_call.1} parent=1 // pred_check
      %p233 = pneg %p56
    $region43: #{tpu_custom_call.1} parent=1 // pred_check_branch
      %235 = sbr.rel (%p233) target = $region45
    $region44: #{tpu_custom_call.1} parent=1 // pred_region
      %v236 = vld [vmem:[#allocation2] sm:$0xff]
      %v237 = vld [vmem:[#allocation2 + $0x8] sm:$0xff]
      %v238 = vld [vmem:[#allocation2 + $0x10] sm:$0xff]
      %v239 = vld [vmem:[#allocation2 + $0x18] sm:$0xff]
      %v240 = vld [vmem:[#allocation2 + $0x20] sm:$0xff]
      %v241 = vld [vmem:[#allocation2 + $0x28] sm:$0xff]
      %v242 = vld [vmem:[#allocation2 + $0x30] sm:$0xff]
      %v243 = vld [vmem:[#allocation2 + $0x38] sm:$0xff]
      %v244 = vld [vmem:[%s2] sm:$0x1]
      %v246 = vlaneseq
      %v247 = vshrl.u32 %v246, 7
      %v248 = vsub.s32 0, %v247
      %v249 = vrot.slane %v244, %v248
      %v251 = vadd.f32 %v236, %v249
      %v252 = vadd.f32 %v237, %v249
      %v253 = vadd.f32 %v238, %v249
      %v254 = vadd.f32 %v239, %v249
      %v255 = vadd.f32 %v240, %v249
      %v256 = vadd.f32 %v241, %v249
      %v257 = vadd.f32 %v242, %v249
      %v258 = vadd.f32 %v243, %v249
      %259 = vadd.xlane.f32.xlu0 %v251
      %v260 = vpop.xlane.xlu0 %259
      %261 = vadd.xlane.f32.xlu0 %v252
      %v262 = vpop.xlane.xlu0 %261
      %263 = vadd.xlane.f32.xlu0 %v253
      %v264 = vpop.xlane.xlu0 %263
      %265 = vadd.xlane.f32.xlu0 %v254
      %v266 = vpop.xlane.xlu0 %265
      %267 = vadd.xlane.f32.xlu0 %v255
      %v268 = vpop.xlane.xlu0 %267
      %269 = vadd.xlane.f32.xlu0 %v256
      %v270 = vpop.xlane.xlu0 %269
      %271 = vadd.xlane.f32.xlu0 %v257
      %v272 = vpop.xlane.xlu0 %271
      %273 = vadd.xlane.f32.xlu0 %v258
      %v274 = vpop.xlane.xlu0 %273
      %v275 = vmul.f32 %v251, %v251
      %v276 = vmul.f32 %v252, %v252
      %v277 = vmul.f32 %v253, %v253
      %v278 = vmul.f32 %v254, %v254
      %v279 = vmul.f32 %v255, %v255
      %v280 = vmul.f32 %v256, %v256
      %v281 = vmul.f32 %v257, %v257
      %v282 = vmul.f32 %v258, %v258
      %283 = vadd.xlane.f32.xlu0 %v275
      %v284 = vpop.xlane.xlu0 %283
      %285 = vadd.xlane.f32.xlu0 %v276
      %v286 = vpop.xlane.xlu0 %285
      %287 = vadd.xlane.f32.xlu0 %v277
      %v288 = vpop.xlane.xlu0 %287
      %289 = vadd.xlane.f32.xlu0 %v278
      %v290 = vpop.xlane.xlu0 %289
      %291 = vadd.xlane.f32.xlu0 %v279
      %v292 = vpop.xlane.xlu0 %291
      %293 = vadd.xlane.f32.xlu0 %v280
      %v294 = vpop.xlane.xlu0 %293
      %295 = vadd.xlane.f32.xlu0 %v281
      %v296 = vpop.xlane.xlu0 %295
      %297 = vadd.xlane.f32.xlu0 %v282
      %v298 = vpop.xlane.xlu0 %297
      %v299 = vmul.f32 %v260, 0.015625
      %v300 = vmul.f32 %v262, 0.015625
      %v301 = vmul.f32 %v264, 0.015625
      %v302 = vmul.f32 %v266, 0.015625
      %v303 = vmul.f32 %v268, 0.015625
      %v304 = vmul.f32 %v270, 0.015625
      %v305 = vmul.f32 %v272, 0.015625
      %v306 = vmul.f32 %v274, 0.015625
      %v307 = vmul.f32 %v284, 0.015625
      %v308 = vmul.f32 %v286, 0.015625
      %v309 = vmul.f32 %v288, 0.015625
      %v310 = vmul.f32 %v290, 0.015625
      %v311 = vmul.f32 %v292, 0.015625
      %v312 = vmul.f32 %v294, 0.015625
      %v313 = vmul.f32 %v296, 0.015625
      %v314 = vmul.f32 %v298, 0.015625
      %v315 = vmul.f32 %v299, %v299
      %v316 = vmul.f32 %v300, %v300
      %v317 = vmul.f32 %v301, %v301
      %v318 = vmul.f32 %v302, %v302
      %v319 = vmul.f32 %v303, %v303
      %v320 = vmul.f32 %v304, %v304
      %v321 = vmul.f32 %v305, %v305
      %v322 = vmul.f32 %v306, %v306
      %v323 = vsub.f32 %v307, %v315
      %v324 = vsub.f32 %v308, %v316
      %v325 = vsub.f32 %v309, %v317
      %v326 = vsub.f32 %v310, %v318
      %v327 = vsub.f32 %v311, %v319
      %v328 = vsub.f32 %v312, %v320
      %v329 = vsub.f32 %v313, %v321
      %v330 = vsub.f32 %v314, %v322
      %v331 = vsub.f32 %v251, %v299
      %v332 = vsub.f32 %v252, %v300
      %v333 = vsub.f32 %v253, %v301
      %v334 = vsub.f32 %v254, %v302
      %v335 = vsub.f32 %v255, %v303
      %v336 = vsub.f32 %v256, %v304
      %v337 = vsub.f32 %v257, %v305
      %v338 = vsub.f32 %v258, %v306
      %v339 = vadd.f32 %v323, 1e-05
      %v340 = vadd.f32 %v324, 1e-05
      %v341 = vadd.f32 %v325, 1e-05
      %v342 = vadd.f32 %v326, 1e-05
      %v343 = vadd.f32 %v327, 1e-05
      %v344 = vadd.f32 %v328, 1e-05
      %v345 = vadd.f32 %v329, 1e-05
      %v346 = vadd.f32 %v330, 1e-05
      %v347 = vrsqrt.pop %v339
      %v348 = vrsqrt.pop %v340
      %v349 = vrsqrt.pop %v341
      %v350 = vrsqrt.pop %v342
      %v351 = vrsqrt.pop %v343
      %v352 = vrsqrt.pop %v344
      %v353 = vrsqrt.pop %v345
      %v354 = vrsqrt.pop %v346
      %v355 = vmul.f32 %v331, %v347
      %v356 = vmul.f32 %v332, %v348
      %v357 = vmul.f32 %v333, %v349
      %v358 = vmul.f32 %v334, %v350
      %v359 = vmul.f32 %v335, %v351
      %v360 = vmul.f32 %v336, %v352
      %v361 = vmul.f32 %v337, %v353
      %v362 = vmul.f32 %v338, %v354
      %v363 = vld [vmem:[%s3] sm:$0x1]
      %v365 = vlaneseq
      %v366 = vshrl.u32 %v365, 7
      %v367 = vsub.s32 0, %v366
      %v368 = vrot.slane %v363, %v367
      %v370 = vmul.f32 %v355, %v368
      %v371 = vmul.f32 %v356, %v368
      %v372 = vmul.f32 %v357, %v368
      %v373 = vmul.f32 %v358, %v368
      %v374 = vmul.f32 %v359, %v368
      %v375 = vmul.f32 %v360, %v368
      %v376 = vmul.f32 %v361, %v368
      %v377 = vmul.f32 %v362, %v368
      %v378 = vld [vmem:[%s4] sm:$0x1]
      %v380 = vlaneseq
      %v381 = vshrl.u32 %v380, 7
      %v382 = vsub.s32 0, %v381
      %v383 = vrot.slane %v378, %v382
      %v385 = vadd.f32 %v370, %v383
      %v386 = vadd.f32 %v371, %v383
      %v387 = vadd.f32 %v372, %v383
      %v388 = vadd.f32 %v373, %v383
      %v389 = vadd.f32 %v374, %v383
      %v390 = vadd.f32 %v375, %v383
      %v391 = vadd.f32 %v376, %v383
      %v392 = vadd.f32 %v377, %v383
      %393 = vadd.xlane.f32.xlu0 %v385
      %v394 = vpop.xlane.xlu0 %393
      %395 = vadd.xlane.f32.xlu0 %v386
      %v396 = vpop.xlane.xlu0 %395
      %397 = vadd.xlane.f32.xlu0 %v387
      %v398 = vpop.xlane.xlu0 %397
      %399 = vadd.xlane.f32.xlu0 %v388
      %v400 = vpop.xlane.xlu0 %399
      %401 = vadd.xlane.f32.xlu0 %v389
      %v402 = vpop.xlane.xlu0 %401
      %403 = vadd.xlane.f32.xlu0 %v390
      %v404 = vpop.xlane.xlu0 %403
      %405 = vadd.xlane.f32.xlu0 %v391
      %v406 = vpop.xlane.xlu0 %405
      %407 = vadd.xlane.f32.xlu0 %v392
      %v408 = vpop.xlane.xlu0 %407
      %v409 = vmul.f32 %v385, %v385
      %v410 = vmul.f32 %v386, %v386
      %v411 = vmul.f32 %v387, %v387
      %v412 = vmul.f32 %v388, %v388
      %v413 = vmul.f32 %v389, %v389
      %v414 = vmul.f32 %v390, %v390
      %v415 = vmul.f32 %v391, %v391
      %v416 = vmul.f32 %v392, %v392
      %417 = vadd.xlane.f32.xlu0 %v409
      %v418 = vpop.xlane.xlu0 %417
      %419 = vadd.xlane.f32.xlu0 %v410
      %v420 = vpop.xlane.xlu0 %419
      %421 = vadd.xlane.f32.xlu0 %v411
      %v422 = vpop.xlane.xlu0 %421
      %423 = vadd.xlane.f32.xlu0 %v412
      %v424 = vpop.xlane.xlu0 %423
      %425 = vadd.xlane.f32.xlu0 %v413
      %v426 = vpop.xlane.xlu0 %425
      %427 = vadd.xlane.f32.xlu0 %v414
      %v428 = vpop.xlane.xlu0 %427
      %429 = vadd.xlane.f32.xlu0 %v415
      %v430 = vpop.xlane.xlu0 %429
      %431 = vadd.xlane.f32.xlu0 %v416
      %v432 = vpop.xlane.xlu0 %431
      %v433 = vmul.f32 %v394, 0.015625
      %v434 = vmul.f32 %v396, 0.015625
      %v435 = vmul.f32 %v398, 0.015625
      %v436 = vmul.f32 %v400, 0.015625
      %v437 = vmul.f32 %v402, 0.015625
      %v438 = vmul.f32 %v404, 0.015625
      %v439 = vmul.f32 %v406, 0.015625
      %v440 = vmul.f32 %v408, 0.015625
      %v441 = vmul.f32 %v418, 0.015625
      %v442 = vmul.f32 %v420, 0.015625
      %v443 = vmul.f32 %v422, 0.015625
      %v444 = vmul.f32 %v424, 0.015625
      %v445 = vmul.f32 %v426, 0.015625
      %v446 = vmul.f32 %v428, 0.015625
      %v447 = vmul.f32 %v430, 0.015625
      %v448 = vmul.f32 %v432, 0.015625
      %v449 = vmul.f32 %v433, %v433
      %v450 = vmul.f32 %v434, %v434
      %v451 = vmul.f32 %v435, %v435
      %v452 = vmul.f32 %v436, %v436
      %v453 = vmul.f32 %v437, %v437
      %v454 = vmul.f32 %v438, %v438
      %v455 = vmul.f32 %v439, %v439
      %v456 = vmul.f32 %v440, %v440
      %v457 = vsub.f32 %v441, %v449
      %v458 = vsub.f32 %v442, %v450
      %v459 = vsub.f32 %v443, %v451
      %v460 = vsub.f32 %v444, %v452
      %v461 = vsub.f32 %v445, %v453
      %v462 = vsub.f32 %v446, %v454
      %v463 = vsub.f32 %v447, %v455
      %v464 = vsub.f32 %v448, %v456
      %v465 = vsub.f32 %v385, %v433
      %v466 = vsub.f32 %v386, %v434
      %v467 = vsub.f32 %v387, %v435
      %v468 = vsub.f32 %v388, %v436
      %v469 = vsub.f32 %v389, %v437
      %v470 = vsub.f32 %v390, %v438
      %v471 = vsub.f32 %v391, %v439
      %v472 = vsub.f32 %v392, %v440
      %v473 = vadd.f32 %v457, 1e-05
      %v474 = vadd.f32 %v458, 1e-05
      %v475 = vadd.f32 %v459, 1e-05
      %v476 = vadd.f32 %v460, 1e-05
      %v477 = vadd.f32 %v461, 1e-05
      %v478 = vadd.f32 %v462, 1e-05
      %v479 = vadd.f32 %v463, 1e-05
      %v480 = vadd.f32 %v464, 1e-05
      %v481 = vrsqrt.pop %v473
      %v482 = vrsqrt.pop %v474
      %v483 = vrsqrt.pop %v475
      %v484 = vrsqrt.pop %v476
      %v485 = vrsqrt.pop %v477
      %v486 = vrsqrt.pop %v478
      %v487 = vrsqrt.pop %v479
      %v488 = vrsqrt.pop %v480
      %v489 = vmul.f32 %v465, %v481
      %v490 = vmul.f32 %v466, %v482
      %v491 = vmul.f32 %v467, %v483
      %v492 = vmul.f32 %v468, %v484
      %v493 = vmul.f32 %v469, %v485
      %v494 = vmul.f32 %v470, %v486
      %v495 = vmul.f32 %v471, %v487
      %v496 = vmul.f32 %v472, %v488
      %v497 = vld [vmem:[%s5] sm:$0x1]
      %v499 = vlaneseq
      %v500 = vshrl.u32 %v499, 7
      %v501 = vsub.s32 0, %v500
      %v502 = vrot.slane %v497, %v501
      %v504 = vmul.f32 %v489, %v502
      %v505 = vmul.f32 %v490, %v502
      %v506 = vmul.f32 %v491, %v502
      %v507 = vmul.f32 %v492, %v502
      %v508 = vmul.f32 %v493, %v502
      %v509 = vmul.f32 %v494, %v502
      %v510 = vmul.f32 %v495, %v502
      %v511 = vmul.f32 %v496, %v502
      %v512 = vld [vmem:[%s6] sm:$0x1]
      %v514 = vlaneseq
      %v515 = vshrl.u32 %v514, 7
      %v516 = vsub.s32 0, %v515
      %v517 = vrot.slane %v512, %v516
      %v519 = vadd.f32 %v504, %v517
      %v520 = vadd.f32 %v505, %v517
      %v521 = vadd.f32 %v506, %v517
      %v522 = vadd.f32 %v507, %v517
      %v523 = vadd.f32 %v508, %v517
      %v524 = vadd.f32 %v509, %v517
      %v525 = vadd.f32 %v510, %v517
      %v526 = vadd.f32 %v511, %v517
      %527 = vst [vmem:[#allocation8] sm:$0xff] %v519
      %528 = vst [vmem:[#allocation8 + $0x8] sm:$0xff] %v520
      %529 = vst [vmem:[#allocation8 + $0x10] sm:$0xff] %v521
      %530 = vst [vmem:[#allocation8 + $0x18] sm:$0xff] %v522
      %531 = vst [vmem:[#allocation8 + $0x20] sm:$0xff] %v523
      %532 = vst [vmem:[#allocation8 + $0x28] sm:$0xff] %v524
      %533 = vst [vmem:[#allocation8 + $0x30] sm:$0xff] %v525
      %534 = vst [vmem:[#allocation8 + $0x38] sm:$0xff] %v526
    $region45: #{tpu_custom_call.1} parent=1 // pred_fallthru
      _
    // Predicated region
    $region46: #{tpu_custom_call.1} parent=1 // pred_check
      _
    $region47: #{tpu_custom_call.1} parent=1 // pred_check_branch
      %536 = sbr.rel (0) target = $region49
    $region48: #{tpu_custom_call.1} parent=1 // pred_region
      %s538 = ssub.s32 1024, 1024
      %539 = vsyncadd [#allocation5], %s538
      %s540 = sshll.u32 [#allocation8], 4
      %s541 = int_to_ptr.vmem [resolvable:$true] %s540
      %546 = dma.vmem_to_hbm [thread:$0]  %s541, 1024, %s7, [#allocation5], 128, 128, 8
    $region49: #{tpu_custom_call.1} parent=1 // pred_fallthru
      _
    // Predicated region
    $region50: #{tpu_custom_call.1} parent=1 // pred_check
      _
    $region51: #{tpu_custom_call.1} parent=1 // pred_check_branch
      %548 = sbr.rel (0) target = $region53
    $region52: #{tpu_custom_call.1} parent=1 // pred_region
      %549 = dma.done [#allocation5], 1024
    $region53: #{tpu_custom_call.1} parent=1 // pred_fallthru
      _
    %550 = vsyncpa [#allocation4], 1
    %551 = vsyncpa [#allocation7], 1
    %552 = vsyncpa [#allocation5], 1

</llo_original>
